<compile_context>
chip_gen: v7x
topology: tpu7x:2x2x1
jax: 0.10.0
libtpu: 0.0.40
codegen_flags: <defaults>
</compile_context>

<pallas_src>
import functools

import jax
import jax.numpy as jnp
from jax import lax
from jax.experimental import pallas as pl
from jax.experimental.pallas import tpu as pltpu


def lstm_fused_kernel(x_ref, wih_ref, whh_ref, b_ref, wfc_ref, bfc_ref,
                      out_ref, *, batch, seq, hidden, in_size, out_size):
    """Full LSTM recurrence + Linear head in one invocation.

    x_ref:   (S*B, I)  inputs, rows ordered (t, b)
    wih_ref: (I, 4H)   W_ih^T
    whh_ref: (H, 4H)   W_hh^T
    b_ref:   (1, 4H)   b_ih + b_hh
    wfc_ref: (O, H)    fc weight (PyTorch layout)
    bfc_ref: (1, O)    fc bias
    out_ref: (B, O)    fc(h_last)
    """
    B, S, H, I, O = batch, seq, hidden, in_size, out_size
    G = 4 * H

    # ---- Hoisted input projection for ALL timesteps (prologue) ----------
    x = x_ref[...]                                        # (S*B, I)
    if I == 1:
        # Outer product on the VPU: a contraction depth of 1 would waste a
        # full MXU systolic pass + result-FIFO drain.
        xp = x * wih_ref[...] + b_ref[...]                # (S*B, 4H)
    else:
        xp = jnp.dot(x, wih_ref[...],
                     preferred_element_type=jnp.float32) + b_ref[...]

    whh = whh_ref[...]                                    # (H, 4H), resident

    # ---- Hoisted constants for the single-tanh gate activation ----------
    # sigmoid(z) = 0.5*tanh(z/2) + 0.5  => one EUP push covers i, f, g, o.
    lane = lax.broadcasted_iota(jnp.int32, (B, G), 1)
    is_g = (lane >= 2 * H) & (lane < 3 * H)
    premul = jnp.where(is_g, 1.0, 0.5).astype(jnp.float32)   # also the postmul
    postadd = jnp.where(is_g, 0.0, 0.5).astype(jnp.float32)

    h = jnp.zeros((B, H), jnp.float32)
    c = jnp.zeros((B, H), jnp.float32)

    # Trace-time unroll: S is small & static.  (Switch to lax.fori_loop with a
    # VMEM-staged xp once S grows past ~32-64 to bound vreg live ranges.)
    for t in range(S):
        # Contiguous sublane block for step t (rows are (t, b)-ordered).
        gates = xp[t * B:(t + 1) * B, :] + jnp.dot(
            h, whh, preferred_element_type=jnp.float32)    # (B, 4H)
        # One packed tanh: i/f/o lanes become sigmoid, g lanes stay tanh.
        act = jnp.tanh(gates * premul) * premul + postadd
        i_g = act[:, 0:H]
        f_g = act[:, H:2 * H]
        g_g = act[:, 2 * H:3 * H]
        o_g = act[:, 3 * H:4 * H]
        c = f_g * c + i_g * g_g
        h = o_g * jnp.tanh(c)

    # ---- Fused Linear head (epilogue) ------------------------------------
    if O == 1:
        # Depth-H reduce on VPU+XLU; one tiny (B,1) masked store is cheap.
        y = jnp.sum(h * wfc_ref[...], axis=1, keepdims=True) + bfc_ref[...]
    else:
        y = lax.dot_general(h, wfc_ref[...], (((1,), (1,)), ((), ())),
                            preferred_element_type=jnp.float32) + bfc_ref[...]
    out_ref[...] = y


@jax.jit
def lstm_model_forward(x, params):
    """x: (batch, seq, input_size) float32 — same convention as the PyTorch module."""
    w_ih_t, w_hh_t, b, w_fc, b_fc = params
    B, S, I = x.shape
    H = w_hh_t.shape[0]
    O = w_fc.shape[0]

    # Feed rows (t, b)-ordered so per-step blocks are contiguous in the kernel.
    x_tb = jnp.transpose(x, (1, 0, 2)).reshape(S * B, I)

    vmem = pl.BlockSpec(memory_space=pltpu.MemorySpace.VMEM)
    return pl.pallas_call(
        functools.partial(lstm_fused_kernel, batch=B, seq=S, hidden=H,
                          in_size=I, out_size=O),
        out_shape=jax.ShapeDtypeStruct((B, O), jnp.float32),
        in_specs=[vmem] * 6,
        out_specs=vmem,
    )(x_tb, w_ih_t, w_hh_t, b, w_fc, b_fc)


def init_params(key, input_size, hidden_size, output_size):
    """Deterministic init mirroring PyTorch's U(-1/sqrt(H), 1/sqrt(H))."""
    H = hidden_size
    k = 1.0 / jnp.sqrt(jnp.float32(H))
    ks = jax.random.split(key, 6)
    w_ih = jax.random.uniform(ks[0], (4 * H, input_size), jnp.float32, -k, k)
    w_hh = jax.random.uniform(ks[1], (4 * H, H), jnp.float32, -k, k)
    b_ih = jax.random.uniform(ks[2], (4 * H,), jnp.float32, -k, k)
    b_hh = jax.random.uniform(ks[3], (4 * H,), jnp.float32, -k, k)
    w_fc = jax.random.uniform(ks[4], (output_size, H), jnp.float32, -k, k)
    b_fc = jax.random.uniform(ks[5], (output_size,), jnp.float32, -k, k)
    # Kernel-friendly forms; fold the two LSTM biases together.
    return (w_ih.T, w_hh.T, (b_ih + b_hh)[None, :], w_fc, b_fc[None, :])


def reference_forward(x, params):
    """Pure-JAX reference of the PyTorch forward for validation."""
    w_ih_t, w_hh_t, b, w_fc, b_fc = params
    B = x.shape[0]
    H = w_hh_t.shape[0]

    def step(carry, x_t):
        h, c = carry
        gates = x_t @ w_ih_t + h @ w_hh_t + b[0]
        i = jax.nn.sigmoid(gates[:, 0:H])
        f = jax.nn.sigmoid(gates[:, H:2 * H])
        g = jnp.tanh(gates[:, 2 * H:3 * H])
        o = jax.nn.sigmoid(gates[:, 3 * H:4 * H])
        c = f * c + i * g
        h = o * jnp.tanh(c)
        return (h, c), None

    h0 = jnp.zeros((B, H), jnp.float32)
    c0 = jnp.zeros((B, H), jnp.float32)
    (h_last, _), _ = lax.scan(step, (h0, c0), jnp.transpose(x, (1, 0, 2)))
    return h_last @ w_fc.T + b_fc


if __name__ == "__main__":
    # Small shapes consistent with the module's forward:
    # batch=2, seq=8, input_size=1, hidden_size=32, output_size=1
    B, S, I, H, O = 2, 8, 1, 32, 1

    key = jax.random.PRNGKey(0)
    k_x, k_p = jax.random.split(key)
    x = jax.random.normal(k_x, (B, S, I), jnp.float32)
    params = init_params(k_p, I, H, O)

    out = lstm_model_forward(x, params)
    out = jax.block_until_ready(out)

    ref = reference_forward(x, params)
    assert out.shape == (B, O), out.shape
    assert jnp.allclose(out, ref, rtol=1e-4, atol=1e-5), (out, ref)

    print("KERNEL_OK")
</pallas_src>

<mosaic_0001>
module attributes {stable_mosaic.version = 11 : i64} {
  func.func @lstm_fused_kernel(%arg0: memref<16x1xf32, #tpu.memory_space<vmem>>, %arg1: memref<1x128xf32, #tpu.memory_space<vmem>>, %arg2: memref<32x128xf32, #tpu.memory_space<vmem>>, %arg3: memref<1x128xf32, #tpu.memory_space<vmem>>, %arg4: memref<1x32xf32, #tpu.memory_space<vmem>>, %arg5: memref<1x1xf32, #tpu.memory_space<vmem>>, %arg6: memref<2x1xf32, #tpu.memory_space<vmem>>) attributes {dimension_semantics = [], scalar_prefetch = 0 : i64, scratch_operands = 0 : i64, tpu.core_type = #tpu.core_type<tc>} {
    %c0 = arith.constant 0 : index
    %c0_0 = arith.constant 0 : index
    %0 = vector.load %arg0[%c0, %c0_0] : memref<16x1xf32, #tpu.memory_space<vmem>>, vector<16x1xf32>
    %c0_1 = arith.constant 0 : index
    %c0_2 = arith.constant 0 : index
    %1 = vector.load %arg1[%c0_1, %c0_2] : memref<1x128xf32, #tpu.memory_space<vmem>>, vector<1x128xf32>
    %2 = vector.broadcast %0 : vector<16x1xf32> to vector<16x128xf32>
    %3 = vector.broadcast %1 : vector<1x128xf32> to vector<16x128xf32>
    %4 = arith.mulf %2, %3 : vector<16x128xf32>
    %c0_3 = arith.constant 0 : index
    %c0_4 = arith.constant 0 : index
    %5 = vector.load %arg3[%c0_3, %c0_4] : memref<1x128xf32, #tpu.memory_space<vmem>>, vector<1x128xf32>
    %6 = vector.broadcast %5 : vector<1x128xf32> to vector<16x128xf32>
    %7 = arith.addf %4, %6 : vector<16x128xf32>
    %c0_5 = arith.constant 0 : index
    %c0_6 = arith.constant 0 : index
    %8 = vector.load %arg2[%c0_5, %c0_6] : memref<32x128xf32, #tpu.memory_space<vmem>>, vector<32x128xf32>
    %9 = tpu.iota {dimensions = array<i32: 1>} : vector<2x128xi32>
    %c64_i32 = arith.constant 64 : i32
    %10 = vector.broadcast %c64_i32 : i32 to vector<2x128xi32>
    %11 = arith.cmpi sge, %9, %10 : vector<2x128xi32>
    %c96_i32 = arith.constant 96 : i32
    %12 = vector.broadcast %c96_i32 : i32 to vector<2x128xi32>
    %13 = arith.cmpi slt, %9, %12 : vector<2x128xi32>
    %14 = arith.andi %11, %13 : vector<2x128xi1>
    %cst = arith.constant 1.000000e+00 : f32
    %cst_7 = arith.constant 5.000000e-01 : f32
    %15 = vector.broadcast %cst : f32 to vector<2x128xf32>
    %16 = vector.broadcast %cst_7 : f32 to vector<2x128xf32>
    %17 = arith.select %14, %15, %16 : vector<2x128xi1>, vector<2x128xf32>
    %cst_8 = arith.constant 0.000000e+00 : f32
    %cst_9 = arith.constant 5.000000e-01 : f32
    %18 = vector.broadcast %cst_8 : f32 to vector<2x128xf32>
    %19 = vector.broadcast %cst_9 : f32 to vector<2x128xf32>
    %20 = arith.select %14, %18, %19 : vector<2x128xi1>, vector<2x128xf32>
    %cst_10 = arith.constant 0.000000e+00 : f32
    %21 = vector.broadcast %cst_10 : f32 to vector<2x32xf32>
    %cst_11 = arith.constant 0.000000e+00 : f32
    %22 = vector.broadcast %cst_11 : f32 to vector<2x32xf32>
    %23 = vector.extract_strided_slice %7 {offsets = [0, 0], sizes = [2, 128], strides = [1, 1]} : vector<16x128xf32> to vector<2x128xf32>
    %cst_12 = arith.constant dense<0.000000e+00> : vector<2x128xf32>
    %24 = tpu.matmul %21, %8, %cst_12 {dimension_numbers = #tpu.dot_dimension_numbers<[1], [0], [0], [1], [0, 0, 1, 1], [], []>} : vector<2x32xf32>, vector<32x128xf32>, vector<2x128xf32> -> vector<2x128xf32>
    %25 = arith.addf %23, %24 : vector<2x128xf32>
    %26 = arith.mulf %25, %17 : vector<2x128xf32>
    %27 = math.tanh %26 : vector<2x128xf32>
    %28 = arith.mulf %27, %17 : vector<2x128xf32>
    %29 = arith.addf %28, %20 : vector<2x128xf32>
    %30 = vector.extract_strided_slice %29 {offsets = [0, 0], sizes = [2, 32], strides = [1, 1]} : vector<2x128xf32> to vector<2x32xf32>
    %31 = vector.extract_strided_slice %29 {offsets = [0, 32], sizes = [2, 32], strides = [1, 1]} : vector<2x128xf32> to vector<2x32xf32>
    %32 = vector.extract_strided_slice %29 {offsets = [0, 64], sizes = [2, 32], strides = [1, 1]} : vector<2x128xf32> to vector<2x32xf32>
    %33 = vector.extract_strided_slice %29 {offsets = [0, 96], sizes = [2, 32], strides = [1, 1]} : vector<2x128xf32> to vector<2x32xf32>
    %34 = arith.mulf %31, %22 : vector<2x32xf32>
    %35 = arith.mulf %30, %32 : vector<2x32xf32>
    %36 = arith.addf %34, %35 : vector<2x32xf32>
    %37 = math.tanh %36 : vector<2x32xf32>
    %38 = arith.mulf %33, %37 : vector<2x32xf32>
    %39 = vector.extract_strided_slice %7 {offsets = [2, 0], sizes = [2, 128], strides = [1, 1]} : vector<16x128xf32> to vector<2x128xf32>
    %cst_13 = arith.constant dense<0.000000e+00> : vector<2x128xf32>
    %40 = tpu.matmul %38, %8, %cst_13 {dimension_numbers = #tpu.dot_dimension_numbers<[1], [0], [0], [1], [0, 0, 1, 1], [], []>} : vector<2x32xf32>, vector<32x128xf32>, vector<2x128xf32> -> vector<2x128xf32>
    %41 = arith.addf %39, %40 : vector<2x128xf32>
    %42 = arith.mulf %41, %17 : vector<2x128xf32>
    %43 = math.tanh %42 : vector<2x128xf32>
    %44 = arith.mulf %43, %17 : vector<2x128xf32>
    %45 = arith.addf %44, %20 : vector<2x128xf32>
    %46 = vector.extract_strided_slice %45 {offsets = [0, 0], sizes = [2, 32], strides = [1, 1]} : vector<2x128xf32> to vector<2x32xf32>
    %47 = vector.extract_strided_slice %45 {offsets = [0, 32], sizes = [2, 32], strides = [1, 1]} : vector<2x128xf32> to vector<2x32xf32>
    %48 = vector.extract_strided_slice %45 {offsets = [0, 64], sizes = [2, 32], strides = [1, 1]} : vector<2x128xf32> to vector<2x32xf32>
    %49 = vector.extract_strided_slice %45 {offsets = [0, 96], sizes = [2, 32], strides = [1, 1]} : vector<2x128xf32> to vector<2x32xf32>
    %50 = arith.mulf %47, %36 : vector<2x32xf32>
    %51 = arith.mulf %46, %48 : vector<2x32xf32>
    %52 = arith.addf %50, %51 : vector<2x32xf32>
    %53 = math.tanh %52 : vector<2x32xf32>
    %54 = arith.mulf %49, %53 : vector<2x32xf32>
    %55 = vector.extract_strided_slice %7 {offsets = [4, 0], sizes = [2, 128], strides = [1, 1]} : vector<16x128xf32> to vector<2x128xf32>
    %cst_14 = arith.constant dense<0.000000e+00> : vector<2x128xf32>
    %56 = tpu.matmul %54, %8, %cst_14 {dimension_numbers = #tpu.dot_dimension_numbers<[1], [0], [0], [1], [0, 0, 1, 1], [], []>} : vector<2x32xf32>, vector<32x128xf32>, vector<2x128xf32> -> vector<2x128xf32>
    %57 = arith.addf %55, %56 : vector<2x128xf32>
    %58 = arith.mulf %57, %17 : vector<2x128xf32>
    %59 = math.tanh %58 : vector<2x128xf32>
    %60 = arith.mulf %59, %17 : vector<2x128xf32>
    %61 = arith.addf %60, %20 : vector<2x128xf32>
    %62 = vector.extract_strided_slice %61 {offsets = [0, 0], sizes = [2, 32], strides = [1, 1]} : vector<2x128xf32> to vector<2x32xf32>
    %63 = vector.extract_strided_slice %61 {offsets = [0, 32], sizes = [2, 32], strides = [1, 1]} : vector<2x128xf32> to vector<2x32xf32>
    %64 = vector.extract_strided_slice %61 {offsets = [0, 64], sizes = [2, 32], strides = [1, 1]} : vector<2x128xf32> to vector<2x32xf32>
    %65 = vector.extract_strided_slice %61 {offsets = [0, 96], sizes = [2, 32], strides = [1, 1]} : vector<2x128xf32> to vector<2x32xf32>
    %66 = arith.mulf %63, %52 : vector<2x32xf32>
    %67 = arith.mulf %62, %64 : vector<2x32xf32>
    %68 = arith.addf %66, %67 : vector<2x32xf32>
    %69 = math.tanh %68 : vector<2x32xf32>
    %70 = arith.mulf %65, %69 : vector<2x32xf32>
    %71 = vector.extract_strided_slice %7 {offsets = [6, 0], sizes = [2, 128], strides = [1, 1]} : vector<16x128xf32> to vector<2x128xf32>
    %cst_15 = arith.constant dense<0.000000e+00> : vector<2x128xf32>
    %72 = tpu.matmul %70, %8, %cst_15 {dimension_numbers = #tpu.dot_dimension_numbers<[1], [0], [0], [1], [0, 0, 1, 1], [], []>} : vector<2x32xf32>, vector<32x128xf32>, vector<2x128xf32> -> vector<2x128xf32>
    %73 = arith.addf %71, %72 : vector<2x128xf32>
    %74 = arith.mulf %73, %17 : vector<2x128xf32>
    %75 = math.tanh %74 : vector<2x128xf32>
    %76 = arith.mulf %75, %17 : vector<2x128xf32>
    %77 = arith.addf %76, %20 : vector<2x128xf32>
    %78 = vector.extract_strided_slice %77 {offsets = [0, 0], sizes = [2, 32], strides = [1, 1]} : vector<2x128xf32> to vector<2x32xf32>
    %79 = vector.extract_strided_slice %77 {offsets = [0, 32], sizes = [2, 32], strides = [1, 1]} : vector<2x128xf32> to vector<2x32xf32>
    %80 = vector.extract_strided_slice %77 {offsets = [0, 64], sizes = [2, 32], strides = [1, 1]} : vector<2x128xf32> to vector<2x32xf32>
    %81 = vector.extract_strided_slice %77 {offsets = [0, 96], sizes = [2, 32], strides = [1, 1]} : vector<2x128xf32> to vector<2x32xf32>
    %82 = arith.mulf %79, %68 : vector<2x32xf32>
    %83 = arith.mulf %78, %80 : vector<2x32xf32>
    %84 = arith.addf %82, %83 : vector<2x32xf32>
    %85 = math.tanh %84 : vector<2x32xf32>
    %86 = arith.mulf %81, %85 : vector<2x32xf32>
    %87 = vector.extract_strided_slice %7 {offsets = [8, 0], sizes = [2, 128], strides = [1, 1]} : vector<16x128xf32> to vector<2x128xf32>
    %cst_16 = arith.constant dense<0.000000e+00> : vector<2x128xf32>
    %88 = tpu.matmul %86, %8, %cst_16 {dimension_numbers = #tpu.dot_dimension_numbers<[1], [0], [0], [1], [0, 0, 1, 1], [], []>} : vector<2x32xf32>, vector<32x128xf32>, vector<2x128xf32> -> vector<2x128xf32>
    %89 = arith.addf %87, %88 : vector<2x128xf32>
    %90 = arith.mulf %89, %17 : vector<2x128xf32>
    %91 = math.tanh %90 : vector<2x128xf32>
    %92 = arith.mulf %91, %17 : vector<2x128xf32>
    %93 = arith.addf %92, %20 : vector<2x128xf32>
    %94 = vector.extract_strided_slice %93 {offsets = [0, 0], sizes = [2, 32], strides = [1, 1]} : vector<2x128xf32> to vector<2x32xf32>
    %95 = vector.extract_strided_slice %93 {offsets = [0, 32], sizes = [2, 32], strides = [1, 1]} : vector<2x128xf32> to vector<2x32xf32>
    %96 = vector.extract_strided_slice %93 {offsets = [0, 64], sizes = [2, 32], strides = [1, 1]} : vector<2x128xf32> to vector<2x32xf32>
    %97 = vector.extract_strided_slice %93 {offsets = [0, 96], sizes = [2, 32], strides = [1, 1]} : vector<2x128xf32> to vector<2x32xf32>
    %98 = arith.mulf %95, %84 : vector<2x32xf32>
    %99 = arith.mulf %94, %96 : vector<2x32xf32>
    %100 = arith.addf %98, %99 : vector<2x32xf32>
    %101 = math.tanh %100 : vector<2x32xf32>
    %102 = arith.mulf %97, %101 : vector<2x32xf32>
    %103 = vector.extract_strided_slice %7 {offsets = [10, 0], sizes = [2, 128], strides = [1, 1]} : vector<16x128xf32> to vector<2x128xf32>
    %cst_17 = arith.constant dense<0.000000e+00> : vector<2x128xf32>
    %104 = tpu.matmul %102, %8, %cst_17 {dimension_numbers = #tpu.dot_dimension_numbers<[1], [0], [0], [1], [0, 0, 1, 1], [], []>} : vector<2x32xf32>, vector<32x128xf32>, vector<2x128xf32> -> vector<2x128xf32>
    %105 = arith.addf %103, %104 : vector<2x128xf32>
    %106 = arith.mulf %105, %17 : vector<2x128xf32>
    %107 = math.tanh %106 : vector<2x128xf32>
    %108 = arith.mulf %107, %17 : vector<2x128xf32>
    %109 = arith.addf %108, %20 : vector<2x128xf32>
    %110 = vector.extract_strided_slice %109 {offsets = [0, 0], sizes = [2, 32], strides = [1, 1]} : vector<2x128xf32> to vector<2x32xf32>
    %111 = vector.extract_strided_slice %109 {offsets = [0, 32], sizes = [2, 32], strides = [1, 1]} : vector<2x128xf32> to vector<2x32xf32>
    %112 = vector.extract_strided_slice %109 {offsets = [0, 64], sizes = [2, 32], strides = [1, 1]} : vector<2x128xf32> to vector<2x32xf32>
    %113 = vector.extract_strided_slice %109 {offsets = [0, 96], sizes = [2, 32], strides = [1, 1]} : vector<2x128xf32> to vector<2x32xf32>
    %114 = arith.mulf %111, %100 : vector<2x32xf32>
    %115 = arith.mulf %110, %112 : vector<2x32xf32>
    %116 = arith.addf %114, %115 : vector<2x32xf32>
    %117 = math.tanh %116 : vector<2x32xf32>
    %118 = arith.mulf %113, %117 : vector<2x32xf32>
    %119 = vector.extract_strided_slice %7 {offsets = [12, 0], sizes = [2, 128], strides = [1, 1]} : vector<16x128xf32> to vector<2x128xf32>
    %cst_18 = arith.constant dense<0.000000e+00> : vector<2x128xf32>
    %120 = tpu.matmul %118, %8, %cst_18 {dimension_numbers = #tpu.dot_dimension_numbers<[1], [0], [0], [1], [0, 0, 1, 1], [], []>} : vector<2x32xf32>, vector<32x128xf32>, vector<2x128xf32> -> vector<2x128xf32>
    %121 = arith.addf %119, %120 : vector<2x128xf32>
    %122 = arith.mulf %121, %17 : vector<2x128xf32>
    %123 = math.tanh %122 : vector<2x128xf32>
    %124 = arith.mulf %123, %17 : vector<2x128xf32>
    %125 = arith.addf %124, %20 : vector<2x128xf32>
    %126 = vector.extract_strided_slice %125 {offsets = [0, 0], sizes = [2, 32], strides = [1, 1]} : vector<2x128xf32> to vector<2x32xf32>
    %127 = vector.extract_strided_slice %125 {offsets = [0, 32], sizes = [2, 32], strides = [1, 1]} : vector<2x128xf32> to vector<2x32xf32>
    %128 = vector.extract_strided_slice %125 {offsets = [0, 64], sizes = [2, 32], strides = [1, 1]} : vector<2x128xf32> to vector<2x32xf32>
    %129 = vector.extract_strided_slice %125 {offsets = [0, 96], sizes = [2, 32], strides = [1, 1]} : vector<2x128xf32> to vector<2x32xf32>
    %130 = arith.mulf %127, %116 : vector<2x32xf32>
    %131 = arith.mulf %126, %128 : vector<2x32xf32>
    %132 = arith.addf %130, %131 : vector<2x32xf32>
    %133 = math.tanh %132 : vector<2x32xf32>
    %134 = arith.mulf %129, %133 : vector<2x32xf32>
    %135 = vector.extract_strided_slice %7 {offsets = [14, 0], sizes = [2, 128], strides = [1, 1]} : vector<16x128xf32> to vector<2x128xf32>
    %cst_19 = arith.constant dense<0.000000e+00> : vector<2x128xf32>
    %136 = tpu.matmul %134, %8, %cst_19 {dimension_numbers = #tpu.dot_dimension_numbers<[1], [0], [0], [1], [0, 0, 1, 1], [], []>} : vector<2x32xf32>, vector<32x128xf32>, vector<2x128xf32> -> vector<2x128xf32>
    %137 = arith.addf %135, %136 : vector<2x128xf32>
    %138 = arith.mulf %137, %17 : vector<2x128xf32>
    %139 = math.tanh %138 : vector<2x128xf32>
    %140 = arith.mulf %139, %17 : vector<2x128xf32>
    %141 = arith.addf %140, %20 : vector<2x128xf32>
    %142 = vector.extract_strided_slice %141 {offsets = [0, 0], sizes = [2, 32], strides = [1, 1]} : vector<2x128xf32> to vector<2x32xf32>
    %143 = vector.extract_strided_slice %141 {offsets = [0, 32], sizes = [2, 32], strides = [1, 1]} : vector<2x128xf32> to vector<2x32xf32>
    %144 = vector.extract_strided_slice %141 {offsets = [0, 64], sizes = [2, 32], strides = [1, 1]} : vector<2x128xf32> to vector<2x32xf32>
    %145 = vector.extract_strided_slice %141 {offsets = [0, 96], sizes = [2, 32], strides = [1, 1]} : vector<2x128xf32> to vector<2x32xf32>
    %146 = arith.mulf %143, %132 : vector<2x32xf32>
    %147 = arith.mulf %142, %144 : vector<2x32xf32>
    %148 = arith.addf %146, %147 : vector<2x32xf32>
    %149 = math.tanh %148 : vector<2x32xf32>
    %150 = arith.mulf %145, %149 : vector<2x32xf32>
    %c0_20 = arith.constant 0 : index
    %c0_21 = arith.constant 0 : index
    %151 = vector.load %arg4[%c0_20, %c0_21] : memref<1x32xf32, #tpu.memory_space<vmem>>, vector<1x32xf32>
    %152 = vector.broadcast %151 : vector<1x32xf32> to vector<2x32xf32>
    %153 = arith.mulf %150, %152 : vector<2x32xf32>
    %cst_22 = arith.constant dense<0.000000e+00> : vector<2xf32>
    %154 = vector.multi_reduction <add>, %153, %cst_22 [1] : vector<2x32xf32> to vector<2xf32>
    %155 = vector.shape_cast %154 : vector<2xf32> to vector<2x1xf32>
    %c0_23 = arith.constant 0 : index
    %c0_24 = arith.constant 0 : index
    %156 = vector.load %arg5[%c0_23, %c0_24] : memref<1x1xf32, #tpu.memory_space<vmem>>, vector<1x1xf32>
    %157 = vector.broadcast %156 : vector<1x1xf32> to vector<2x1xf32>
    %158 = arith.addf %155, %157 : vector<2x1xf32>
    %c0_25 = arith.constant 0 : index
    %c0_26 = arith.constant 0 : index
    %159 = vector.load %arg6[%c0_25, %c0_26] : memref<2x1xf32, #tpu.memory_space<vmem>>, vector<2x1xf32>
    tpu.vector_store %arg6[%c0_25, %c0_26], %158 {strides = array<i32>} : memref<2x1xf32, #tpu.memory_space<vmem>>, vector<2x1xf32>,
    return
  }
}

</mosaic_0001>

<llo_original>
// kernel: lstm_model_forward.1
$region0: #{lstm_model_forward.1}
  #allocation0 [shape = 'u32[]', space=smem, size = 0x4, offset = 0x4, fixed_abs, tag = 'smem constant byte address 0x4 - core index']
  #allocation1 [shape = 'u32[144,128]{1,0:T(1,128)}', space=vmem, size = 0x12000, scoped, tag = 'internal scratch']
  #allocation2 [shape = 'f32[1,1]{1,0:T(1,128)S(1)}', space=vmem, size = 0x200, scoped, tag = 'scoped memory for lstm_model_forward.1']
  %s0 = inlined_call_operand.vmem [shape: f32[16,1], index: 0, kind: input, shape index: {}]
  %s1 = inlined_call_operand.vmem [shape: f32[1,128], index: 1, kind: input, shape index: {}]
  %s2 = inlined_call_operand.vmem [shape: f32[32,128], index: 2, kind: input, shape index: {}]
  %s3 = inlined_call_operand.vmem [shape: f32[1,128], index: 3, kind: input, shape index: {}]
  %s4 = inlined_call_operand.vmem [shape: f32[1,32], index: 4, kind: input, shape index: {}]
  %s5 = inlined_call_operand.<no memory space> [shape: f32[1,1], index: 5, kind: input, shape index: {}]
  %s6 = inlined_call_operand.vmem [shape: f32[2,1], index: 6, kind: output, shape index: {}]
  %s7 = sld [smem:[#allocation0]]
  $region34: #{lstm_model_forward.1} parent=0
    _
  %s9 = ssub.s32 1, %s7
  %s10 = scalar_select 0, %s9, %s7
  %v11 = vstv %s5
  %12 = vst [vmem:[#allocation2] sm:$0x1] %v11
  // Predicated region
  $region2: #{lstm_model_forward.1} parent=0 // pred_check
    _
  $region3: #{lstm_model_forward.1} parent=0 // pred_check_branch
    %14 = sbr.rel (0) target = $region5
  $region4: #{lstm_model_forward.1} parent=0 // pred_region
    _
  $region5: #{lstm_model_forward.1} parent=0 // pred_fallthru
    _
  // Predicated region
  $region6: #{lstm_model_forward.1} parent=0 // pred_check
    _
  $region7: #{lstm_model_forward.1} parent=0 // pred_check_branch
    %16 = sbr.rel (0) target = $region9
  $region8: #{lstm_model_forward.1} parent=0 // pred_region
    _
  $region9: #{lstm_model_forward.1} parent=0 // pred_fallthru
    _
  // Predicated region
  $region10: #{lstm_model_forward.1} parent=0 // pred_check
    _
  $region11: #{lstm_model_forward.1} parent=0 // pred_check_branch
    %18 = sbr.rel (0) target = $region13
  $region12: #{lstm_model_forward.1} parent=0 // pred_region
    _
  $region13: #{lstm_model_forward.1} parent=0 // pred_fallthru
    _
  // Predicated region
  $region14: #{lstm_model_forward.1} parent=0 // pred_check
    _
  $region15: #{lstm_model_forward.1} parent=0 // pred_check_branch
    %20 = sbr.rel (0) target = $region17
  $region16: #{lstm_model_forward.1} parent=0 // pred_region
    _
  $region17: #{lstm_model_forward.1} parent=0 // pred_fallthru
    _
  // Predicated region
  $region18: #{lstm_model_forward.1} parent=0 // pred_check
    _
  $region19: #{lstm_model_forward.1} parent=0 // pred_check_branch
    %22 = sbr.rel (0) target = $region21
  $region20: #{lstm_model_forward.1} parent=0 // pred_region
    _
  $region21: #{lstm_model_forward.1} parent=0 // pred_fallthru
    _
  // Predicated region
  $region22: #{lstm_model_forward.1} parent=0 // pred_check
    _
  $region23: #{lstm_model_forward.1} parent=0 // pred_check_branch
    %24 = sbr.rel (0) target = $region25
  $region24: #{lstm_model_forward.1} parent=0 // pred_region
    _
  $region25: #{lstm_model_forward.1} parent=0 // pred_fallthru
    _
  %v25 = vld [vmem:[%s0] sm:$0xff]
  %v26 = vld [vmem:[%s0 + $0x8] sm:$0xff]
  %v27 = vld [vmem:[%s1] sm:$0x1]
  %29 = vset.pattern.permute.xlu0 0
  %30 = vperm.xlu0 %29, %v25
  %v31 = vpop.permute.xlu0 %30
  %34 = vset.pattern.permute.xlu0 0
  %35 = vperm.xlu0 %34, %v26
  %v36 = vpop.permute.xlu0 %35
  %v39 = vlaneseq
  %v40 = vshrl.u32 %v39, 7
  %v41 = vsub.s32 0, %v40
  %v42 = vrot.slane %v27, %v41
  %v44 = vmul.f32 %v31, %v42
  %v45 = vmul.f32 %v36, %v42
  %v46 = vld [vmem:[%s3] sm:$0x1]
  %v48 = vlaneseq
  %v49 = vshrl.u32 %v48, 7
  %v50 = vsub.s32 0, %v49
  %v51 = vrot.slane %v46, %v50
  %v53 = vadd.f32 %v44, %v51
  %v54 = vadd.f32 %v45, %v51
  %v55 = vld [vmem:[%s2] sm:$0xff]
  %v56 = vld [vmem:[%s2 + $0x8] sm:$0xff]
  %v57 = vld [vmem:[%s2 + $0x10] sm:$0xff]
  %v58 = vld [vmem:[%s2 + $0x18] sm:$0xff]
  %v59 = vlaneseq
  %v60 = vand.u32 %v59, 127
  %vm61 = vcmp.ge.s32.totalorder %v60, 64
  %vm62 = vcmp.lt.s32.totalorder %v60, 96
  %vm63 = vmand %vm61, %vm62
  %v64 = vsel %vm63, 1.0, 0.5
  %v65 = vsel %vm63, 0.0, 0.5
  %vm66 = vcmask 261120
  %v68 = vsel %vm66, 0.0, 0
  %70 = vmatprep.subr.mxu0 0.0
  %71 = vmatpush1.msra.mxu0 %v55
  %72 = vmatprep.subr.mxu0 0.0
  %73 = vmatpush1.msra.mxu0 %v56
  %74 = vmatprep.subr.mxu0 0.0
  %75 = vmatpush1.msra.mxu0 %v57
  %76 = vmatprep.subr.mxu0 0.0
  %77 = vmatpush1.msra.mxu0 %v58
  %78 = vmatprep.subr.mxu0 0.0
  %79 = vmatpush1.msra.mxu0 0.0
  %80 = vmatprep.subr.mxu0 0.0
  %81 = vmatpush1.msra.mxu0 0.0
  %82 = vmatprep.subr.mxu0 0.0
  %83 = vmatpush1.msra.mxu0 0.0
  %84 = vmatprep.subr.mxu0 0.0
  %85 = vmatpush1.msra.mxu0 0.0
  %86 = vmatprep.subr.mxu0 0.0
  %87 = vmatpush1.msra.mxu0 0.0
  %88 = vmatprep.subr.mxu0 0.0
  %89 = vmatpush1.msra.mxu0 0.0
  %90 = vmatprep.subr.mxu0 0.0
  %91 = vmatpush1.msra.mxu0 0.0
  %92 = vmatprep.subr.mxu0 0.0
  %93 = vmatpush1.msra.mxu0 0.0
  %94 = vmatprep.subr.mxu0 0.0
  %95 = vmatpush1.msra.mxu0 0.0
  %96 = vmatprep.subr.mxu0 0.0
  %97 = vmatpush1.msra.mxu0 0.0
  %98 = vmatprep.subr.mxu0 0.0
  %99 = vmatpush1.msra.mxu0 0.0
  %100 = vmatprep.subr.mxu0 0.0
  %101 = vmatpush1.msra.mxu0 0.0
  %102 = vmatprep.subr.mxu0 0.0
  %103 = vmatpush1.msra.mxu0 0.0
  %104 = vmatprep.subr.mxu0 0.0
  %105 = vmatpush1.msra.mxu0 0.0
  %106 = vmatprep.subr.mxu0 0.0
  %107 = vmatpush1.msra.mxu0 0.0
  %108 = vmatprep.subr.mxu0 0.0
  %109 = vmatpush1.msra.mxu0 0.0
  %110 = vmatprep.subr.mxu0 0.0
  %111 = vmatpush1.msra.mxu0 0.0
  %112 = vmatprep.subr.mxu0 0.0
  %113 = vmatpush1.msra.mxu0 0.0
  %114 = vmatprep.subr.mxu0 0.0
  %115 = vmatpush1.msra.mxu0 0.0
  %116 = vmatprep.subr.mxu0 0.0
  %117 = vmatpush1.msra.mxu0 0.0
  %118 = vmatprep.subr.mxu0 0.0
  %119 = vmatpush1.msra.mxu0 0.0
  %120 = vmatprep.subr.mxu0 0.0
  %121 = vmatpush1.msra.mxu0 0.0
  %122 = vmatprep.subr.mxu0 0.0
  %123 = vmatpush1.msra.mxu0 0.0
  %124 = vmatprep.subr.mxu0 0.0
  %125 = vmatpush1.msra.mxu0 0.0
  %126 = vmatprep.subr.mxu0 0.0
  %127 = vmatpush1.msra.mxu0 0.0
  %128 = vmatprep.subr.mxu0 0.0
  %129 = vmatpush1.msra.mxu0 0.0
  %130 = vmatprep.subr.mxu0 0.0
  %131 = vmatpush1.msra.mxu0 0.0
  %132 = vmatprep.subr.mxu0 0.0
  %133 = vmatpush1.msra.mxu0 0.0
  %134 = vmatprep.mubr.f32.mxu0 0.0
  %135 = vmatmul.mubr.f32.gmra.mrb[0].mxu0 %v68
  %v136 = vpop.f32.mrb[0].mxu0
  %v137 = vadd.f32 0.0, %v136
  %v138 = vpop.f32.mrb[0].mxu0
  %139 = vdwg.mxu0
  %v140 = vadd.f32 %v53, %v137
  %v141 = vmul.f32 %v140, %v64
  %v142 = vtanh.pop %v141
  %v143 = vmul.f32 %v142, %v64
  %v144 = vadd.f32 %v143, %v65
  %v145 = vmul.f32 %v144, 0.0
  %147 = vrot.lane.b32.xlu0 %v144, 64
  %v148 = vpop.permute.xlu0 %147
  %v150 = vmul.f32 %v144, %v148
  %152 = vrot.lane.b32.xlu0 %v150, 32
  %v153 = vpop.permute.xlu0 %152
  %v155 = vadd.f32 %v145, %v153
  %v156 = vtanh.pop %v155
  %158 = vrot.lane.b32.xlu0 %v156, 64
  %v159 = vpop.permute.xlu0 %158
  %v161 = vmul.f32 %v144, %v159
  %163 = vrot.lane.b32.xlu0 %v161, 32
  %v164 = vpop.permute.xlu0 %163
  %v165 = vsel %vm66, %v164, 0
  %167 = vmatprep.subr.mxu0 0.0
  %168 = vmatpush1.msra.mxu0 %v55
  %169 = vmatprep.subr.mxu0 0.0
  %170 = vmatpush1.msra.mxu0 %v56
  %171 = vmatprep.subr.mxu0 0.0
  %172 = vmatpush1.msra.mxu0 %v57
  %173 = vmatprep.subr.mxu0 0.0
  %174 = vmatpush1.msra.mxu0 %v58
  %175 = vmatprep.subr.mxu0 0.0
  %176 = vmatpush1.msra.mxu0 0.0
  %177 = vmatprep.subr.mxu0 0.0
  %178 = vmatpush1.msra.mxu0 0.0
  %179 = vmatprep.subr.mxu0 0.0
  %180 = vmatpush1.msra.mxu0 0.0
  %181 = vmatprep.subr.mxu0 0.0
  %182 = vmatpush1.msra.mxu0 0.0
  %183 = vmatprep.subr.mxu0 0.0
  %184 = vmatpush1.msra.mxu0 0.0
  %185 = vmatprep.subr.mxu0 0.0
  %186 = vmatpush1.msra.mxu0 0.0
  %187 = vmatprep.subr.mxu0 0.0
  %188 = vmatpush1.msra.mxu0 0.0
  %189 = vmatprep.subr.mxu0 0.0
  %190 = vmatpush1.msra.mxu0 0.0
  %191 = vmatprep.subr.mxu0 0.0
  %192 = vmatpush1.msra.mxu0 0.0
  %193 = vmatprep.subr.mxu0 0.0
  %194 = vmatpush1.msra.mxu0 0.0
  %195 = vmatprep.subr.mxu0 0.0
  %196 = vmatpush1.msra.mxu0 0.0
  %197 = vmatprep.subr.mxu0 0.0
  %198 = vmatpush1.msra.mxu0 0.0
  %199 = vmatprep.subr.mxu0 0.0
  %200 = vmatpush1.msra.mxu0 0.0
  %201 = vmatprep.subr.mxu0 0.0
  %202 = vmatpush1.msra.mxu0 0.0
  %203 = vmatprep.subr.mxu0 0.0
  %204 = vmatpush1.msra.mxu0 0.0
  %205 = vmatprep.subr.mxu0 0.0
  %206 = vmatpush1.msra.mxu0 0.0
  %207 = vmatprep.subr.mxu0 0.0
  %208 = vmatpush1.msra.mxu0 0.0
  %209 = vmatprep.subr.mxu0 0.0
  %210 = vmatpush1.msra.mxu0 0.0
  %211 = vmatprep.subr.mxu0 0.0
  %212 = vmatpush1.msra.mxu0 0.0
  %213 = vmatprep.subr.mxu0 0.0
  %214 = vmatpush1.msra.mxu0 0.0
  %215 = vmatprep.subr.mxu0 0.0
  %216 = vmatpush1.msra.mxu0 0.0
  %217 = vmatprep.subr.mxu0 0.0
  %218 = vmatpush1.msra.mxu0 0.0
  %219 = vmatprep.subr.mxu0 0.0
  %220 = vmatpush1.msra.mxu0 0.0
  %221 = vmatprep.subr.mxu0 0.0
  %222 = vmatpush1.msra.mxu0 0.0
  %223 = vmatprep.subr.mxu0 0.0
  %224 = vmatpush1.msra.mxu0 0.0
  %225 = vmatprep.subr.mxu0 0.0
  %226 = vmatpush1.msra.mxu0 0.0
  %227 = vmatprep.subr.mxu0 0.0
  %228 = vmatpush1.msra.mxu0 0.0
  %229 = vmatprep.subr.mxu0 0.0
  %230 = vmatpush1.msra.mxu0 0.0
  %231 = vmatprep.mubr.f32.mxu0 0.0
  %232 = vmatmul.mubr.f32.gmra.mrb[0].mxu0 %v165
  %v233 = vpop.f32.mrb[0].mxu0
  %v234 = vadd.f32 0.0, %v233
  %v235 = vpop.f32.mrb[0].mxu0
  %236 = vdwg.mxu0
  %v238 = vrot.slane %v234, 6
  %v240 = vadd.f32 %v53, %v238
  %v241 = vmul.f32 %v240, %v64
  %v242 = vtanh.pop %v241
  %v243 = vmul.f32 %v242, %v64
  %v244 = vadd.f32 %v243, %v65
  %v246 = vrot.slane %v155, 6
  %v248 = vmul.f32 %v244, %v246
  %250 = vrot.lane.b32.xlu0 %v244, 64
  %v251 = vpop.permute.xlu0 %250
  %v253 = vmul.f32 %v244, %v251
  %255 = vrot.lane.b32.xlu0 %v253, 32
  %v256 = vpop.permute.xlu0 %255
  %v258 = vadd.f32 %v248, %v256
  %v259 = vtanh.pop %v258
  %261 = vrot.lane.b32.xlu0 %v259, 64
  %v262 = vpop.permute.xlu0 %261
  %v264 = vmul.f32 %v244, %v262
  %v266 = vrot.slane %v264, 2
  %267 = vrot.lane.b32.xlu0 %v266, 32
  %v268 = vpop.permute.xlu0 %267
  %v269 = vsel %vm66, %v268, 0
  %271 = vmatprep.subr.mxu0 0.0
  %272 = vmatpush1.msra.mxu0 %v55
  %273 = vmatprep.subr.mxu0 0.0
  %274 = vmatpush1.msra.mxu0 %v56
  %275 = vmatprep.subr.mxu0 0.0
  %276 = vmatpush1.msra.mxu0 %v57
  %277 = vmatprep.subr.mxu0 0.0
  %278 = vmatpush1.msra.mxu0 %v58
  %279 = vmatprep.subr.mxu0 0.0
  %280 = vmatpush1.msra.mxu0 0.0
  %281 = vmatprep.subr.mxu0 0.0
  %282 = vmatpush1.msra.mxu0 0.0
  %283 = vmatprep.subr.mxu0 0.0
  %284 = vmatpush1.msra.mxu0 0.0
  %285 = vmatprep.subr.mxu0 0.0
  %286 = vmatpush1.msra.mxu0 0.0
  %287 = vmatprep.subr.mxu0 0.0
  %288 = vmatpush1.msra.mxu0 0.0
  %289 = vmatprep.subr.mxu0 0.0
  %290 = vmatpush1.msra.mxu0 0.0
  %291 = vmatprep.subr.mxu0 0.0
  %292 = vmatpush1.msra.mxu0 0.0
  %293 = vmatprep.subr.mxu0 0.0
  %294 = vmatpush1.msra.mxu0 0.0
  %295 = vmatprep.subr.mxu0 0.0
  %296 = vmatpush1.msra.mxu0 0.0
  %297 = vmatprep.subr.mxu0 0.0
  %298 = vmatpush1.msra.mxu0 0.0
  %299 = vmatprep.subr.mxu0 0.0
  %300 = vmatpush1.msra.mxu0 0.0
  %301 = vmatprep.subr.mxu0 0.0
  %302 = vmatpush1.msra.mxu0 0.0
  %303 = vmatprep.subr.mxu0 0.0
  %304 = vmatpush1.msra.mxu0 0.0
  %305 = vmatprep.subr.mxu0 0.0
  %306 = vmatpush1.msra.mxu0 0.0
  %307 = vmatprep.subr.mxu0 0.0
  %308 = vmatpush1.msra.mxu0 0.0
  %309 = vmatprep.subr.mxu0 0.0
  %310 = vmatpush1.msra.mxu0 0.0
  %311 = vmatprep.subr.mxu0 0.0
  %312 = vmatpush1.msra.mxu0 0.0
  %313 = vmatprep.subr.mxu0 0.0
  %314 = vmatpush1.msra.mxu0 0.0
  %315 = vmatprep.subr.mxu0 0.0
  %316 = vmatpush1.msra.mxu0 0.0
  %317 = vmatprep.subr.mxu0 0.0
  %318 = vmatpush1.msra.mxu0 0.0
  %319 = vmatprep.subr.mxu0 0.0
  %320 = vmatpush1.msra.mxu0 0.0
  %321 = vmatprep.subr.mxu0 0.0
  %322 = vmatpush1.msra.mxu0 0.0
  %323 = vmatprep.subr.mxu0 0.0
  %324 = vmatpush1.msra.mxu0 0.0
  %325 = vmatprep.subr.mxu0 0.0
  %326 = vmatpush1.msra.mxu0 0.0
  %327 = vmatprep.subr.mxu0 0.0
  %328 = vmatpush1.msra.mxu0 0.0
  %329 = vmatprep.subr.mxu0 0.0
  %330 = vmatpush1.msra.mxu0 0.0
  %331 = vmatprep.subr.mxu0 0.0
  %332 = vmatpush1.msra.mxu0 0.0
  %333 = vmatprep.subr.mxu0 0.0
  %334 = vmatpush1.msra.mxu0 0.0
  %335 = vmatprep.mubr.f32.mxu0 0.0
  %336 = vmatmul.mubr.f32.gmra.mrb[0].mxu0 %v269
  %v337 = vpop.f32.mrb[0].mxu0
  %v338 = vadd.f32 0.0, %v337
  %v339 = vpop.f32.mrb[0].mxu0
  %340 = vdwg.mxu0
  %v342 = vrot.slane %v338, 4
  %v344 = vadd.f32 %v53, %v342
  %v345 = vmul.f32 %v344, %v64
  %v346 = vtanh.pop %v345
  %v347 = vmul.f32 %v346, %v64
  %v348 = vadd.f32 %v347, %v65
  %v350 = vrot.slane %v258, 6
  %v352 = vmul.f32 %v348, %v350
  %354 = vrot.lane.b32.xlu0 %v348, 64
  %v355 = vpop.permute.xlu0 %354
  %v357 = vmul.f32 %v348, %v355
  %359 = vrot.lane.b32.xlu0 %v357, 32
  %v360 = vpop.permute.xlu0 %359
  %v362 = vadd.f32 %v352, %v360
  %v363 = vtanh.pop %v362
  %365 = vrot.lane.b32.xlu0 %v363, 64
  %v366 = vpop.permute.xlu0 %365
  %v368 = vmul.f32 %v348, %v366
  %v370 = vrot.slane %v368, 4
  %371 = vrot.lane.b32.xlu0 %v370, 32
  %v372 = vpop.permute.xlu0 %371
  %v373 = vsel %vm66, %v372, 0
  %375 = vmatprep.subr.mxu0 0.0
  %376 = vmatpush1.msra.mxu0 %v55
  %377 = vmatprep.subr.mxu0 0.0
  %378 = vmatpush1.msra.mxu0 %v56
  %379 = vmatprep.subr.mxu0 0.0
  %380 = vmatpush1.msra.mxu0 %v57
  %381 = vmatprep.subr.mxu0 0.0
  %382 = vmatpush1.msra.mxu0 %v58
  %383 = vmatprep.subr.mxu0 0.0
  %384 = vmatpush1.msra.mxu0 0.0
  %385 = vmatprep.subr.mxu0 0.0
  %386 = vmatpush1.msra.mxu0 0.0
  %387 = vmatprep.subr.mxu0 0.0
  %388 = vmatpush1.msra.mxu0 0.0
  %389 = vmatprep.subr.mxu0 0.0
  %390 = vmatpush1.msra.mxu0 0.0
  %391 = vmatprep.subr.mxu0 0.0
  %392 = vmatpush1.msra.mxu0 0.0
  %393 = vmatprep.subr.mxu0 0.0
  %394 = vmatpush1.msra.mxu0 0.0
  %395 = vmatprep.subr.mxu0 0.0
  %396 = vmatpush1.msra.mxu0 0.0
  %397 = vmatprep.subr.mxu0 0.0
  %398 = vmatpush1.msra.mxu0 0.0
  %399 = vmatprep.subr.mxu0 0.0
  %400 = vmatpush1.msra.mxu0 0.0
  %401 = vmatprep.subr.mxu0 0.0
  %402 = vmatpush1.msra.mxu0 0.0
  %403 = vmatprep.subr.mxu0 0.0
  %404 = vmatpush1.msra.mxu0 0.0
  %405 = vmatprep.subr.mxu0 0.0
  %406 = vmatpush1.msra.mxu0 0.0
  %407 = vmatprep.subr.mxu0 0.0
  %408 = vmatpush1.msra.mxu0 0.0
  %409 = vmatprep.subr.mxu0 0.0
  %410 = vmatpush1.msra.mxu0 0.0
  %411 = vmatprep.subr.mxu0 0.0
  %412 = vmatpush1.msra.mxu0 0.0
  %413 = vmatprep.subr.mxu0 0.0
  %414 = vmatpush1.msra.mxu0 0.0
  %415 = vmatprep.subr.mxu0 0.0
  %416 = vmatpush1.msra.mxu0 0.0
  %417 = vmatprep.subr.mxu0 0.0
  %418 = vmatpush1.msra.mxu0 0.0
  %419 = vmatprep.subr.mxu0 0.0
  %420 = vmatpush1.msra.mxu0 0.0
  %421 = vmatprep.subr.mxu0 0.0
  %422 = vmatpush1.msra.mxu0 0.0
  %423 = vmatprep.subr.mxu0 0.0
  %424 = vmatpush1.msra.mxu0 0.0
  %425 = vmatprep.subr.mxu0 0.0
  %426 = vmatpush1.msra.mxu0 0.0
  %427 = vmatprep.subr.mxu0 0.0
  %428 = vmatpush1.msra.mxu0 0.0
  %429 = vmatprep.subr.mxu0 0.0
  %430 = vmatpush1.msra.mxu0 0.0
  %431 = vmatprep.subr.mxu0 0.0
  %432 = vmatpush1.msra.mxu0 0.0
  %433 = vmatprep.subr.mxu0 0.0
  %434 = vmatpush1.msra.mxu0 0.0
  %435 = vmatprep.subr.mxu0 0.0
  %436 = vmatpush1.msra.mxu0 0.0
  %437 = vmatprep.subr.mxu0 0.0
  %438 = vmatpush1.msra.mxu0 0.0
  %439 = vmatprep.mubr.f32.mxu0 0.0
  %440 = vmatmul.mubr.f32.gmra.mrb[0].mxu0 %v373
  %v441 = vpop.f32.mrb[0].mxu0
  %v442 = vadd.f32 0.0, %v441
  %v443 = vpop.f32.mrb[0].mxu0
  %444 = vdwg.mxu0
  %v446 = vrot.slane %v442, 2
  %v448 = vadd.f32 %v53, %v446
  %v449 = vmul.f32 %v448, %v64
  %v450 = vtanh.pop %v449
  %v451 = vmul.f32 %v450, %v64
  %v452 = vadd.f32 %v451, %v65
  %v454 = vrot.slane %v362, 6
  %v456 = vmul.f32 %v452, %v454
  %458 = vrot.lane.b32.xlu0 %v452, 64
  %v459 = vpop.permute.xlu0 %458
  %v461 = vmul.f32 %v452, %v459
  %463 = vrot.lane.b32.xlu0 %v461, 32
  %v464 = vpop.permute.xlu0 %463
  %v466 = vadd.f32 %v456, %v464
  %v467 = vtanh.pop %v466
  %469 = vrot.lane.b32.xlu0 %v467, 64
  %v470 = vpop.permute.xlu0 %469
  %v472 = vmul.f32 %v452, %v470
  %v474 = vrot.slane %v472, 6
  %475 = vrot.lane.b32.xlu0 %v474, 32
  %v476 = vpop.permute.xlu0 %475
  %v477 = vsel %vm66, %v476, 0
  %479 = vmatprep.subr.mxu0 0.0
  %480 = vmatpush1.msra.mxu0 %v55
  %481 = vmatprep.subr.mxu0 0.0
  %482 = vmatpush1.msra.mxu0 %v56
  %483 = vmatprep.subr.mxu0 0.0
  %484 = vmatpush1.msra.mxu0 %v57
  %485 = vmatprep.subr.mxu0 0.0
  %486 = vmatpush1.msra.mxu0 %v58
  %487 = vmatprep.subr.mxu0 0.0
  %488 = vmatpush1.msra.mxu0 0.0
  %489 = vmatprep.subr.mxu0 0.0
  %490 = vmatpush1.msra.mxu0 0.0
  %491 = vmatprep.subr.mxu0 0.0
  %492 = vmatpush1.msra.mxu0 0.0
  %493 = vmatprep.subr.mxu0 0.0
  %494 = vmatpush1.msra.mxu0 0.0
  %495 = vmatprep.subr.mxu0 0.0
  %496 = vmatpush1.msra.mxu0 0.0
  %497 = vmatprep.subr.mxu0 0.0
  %498 = vmatpush1.msra.mxu0 0.0
  %499 = vmatprep.subr.mxu0 0.0
  %500 = vmatpush1.msra.mxu0 0.0
  %501 = vmatprep.subr.mxu0 0.0
  %502 = vmatpush1.msra.mxu0 0.0
  %503 = vmatprep.subr.mxu0 0.0
  %504 = vmatpush1.msra.mxu0 0.0
  %505 = vmatprep.subr.mxu0 0.0
  %506 = vmatpush1.msra.mxu0 0.0
  %507 = vmatprep.subr.mxu0 0.0
  %508 = vmatpush1.msra.mxu0 0.0
  %509 = vmatprep.subr.mxu0 0.0
  %510 = vmatpush1.msra.mxu0 0.0
  %511 = vmatprep.subr.mxu0 0.0
  %512 = vmatpush1.msra.mxu0 0.0
  %513 = vmatprep.subr.mxu0 0.0
  %514 = vmatpush1.msra.mxu0 0.0
  %515 = vmatprep.subr.mxu0 0.0
  %516 = vmatpush1.msra.mxu0 0.0
  %517 = vmatprep.subr.mxu0 0.0
  %518 = vmatpush1.msra.mxu0 0.0
  %519 = vmatprep.subr.mxu0 0.0
  %520 = vmatpush1.msra.mxu0 0.0
  %521 = vmatprep.subr.mxu0 0.0
  %522 = vmatpush1.msra.mxu0 0.0
  %523 = vmatprep.subr.mxu0 0.0
  %524 = vmatpush1.msra.mxu0 0.0
  %525 = vmatprep.subr.mxu0 0.0
  %526 = vmatpush1.msra.mxu0 0.0
  %527 = vmatprep.subr.mxu0 0.0
  %528 = vmatpush1.msra.mxu0 0.0
  %529 = vmatprep.subr.mxu0 0.0
  %530 = vmatpush1.msra.mxu0 0.0
  %531 = vmatprep.subr.mxu0 0.0
  %532 = vmatpush1.msra.mxu0 0.0
  %533 = vmatprep.subr.mxu0 0.0
  %534 = vmatpush1.msra.mxu0 0.0
  %535 = vmatprep.subr.mxu0 0.0
  %536 = vmatpush1.msra.mxu0 0.0
  %537 = vmatprep.subr.mxu0 0.0
  %538 = vmatpush1.msra.mxu0 0.0
  %539 = vmatprep.subr.mxu0 0.0
  %540 = vmatpush1.msra.mxu0 0.0
  %541 = vmatprep.subr.mxu0 0.0
  %542 = vmatpush1.msra.mxu0 0.0
  %543 = vmatprep.mubr.f32.mxu0 0.0
  %544 = vmatmul.mubr.f32.gmra.mrb[0].mxu0 %v477
  %v545 = vpop.f32.mrb[0].mxu0
  %v546 = vadd.f32 0.0, %v545
  %v547 = vpop.f32.mrb[0].mxu0
  %548 = vdwg.mxu0
  %v549 = vadd.f32 %v54, %v546
  %v550 = vmul.f32 %v549, %v64
  %v551 = vtanh.pop %v550
  %v552 = vmul.f32 %v551, %v64
  %v553 = vadd.f32 %v552, %v65
  %v555 = vrot.slane %v466, 6
  %v557 = vmul.f32 %v553, %v555
  %559 = vrot.lane.b32.xlu0 %v553, 64
  %v560 = vpop.permute.xlu0 %559
  %v562 = vmul.f32 %v553, %v560
  %564 = vrot.lane.b32.xlu0 %v562, 32
  %v565 = vpop.permute.xlu0 %564
  %v567 = vadd.f32 %v557, %v565
  %v568 = vtanh.pop %v567
  %570 = vrot.lane.b32.xlu0 %v568, 64
  %v571 = vpop.permute.xlu0 %570
  %v573 = vmul.f32 %v553, %v571
  %575 = vrot.lane.b32.xlu0 %v573, 32
  %v576 = vpop.permute.xlu0 %575
  %v577 = vsel %vm66, %v576, 0
  %579 = vmatprep.subr.mxu0 0.0
  %580 = vmatpush1.msra.mxu0 %v55
  %581 = vmatprep.subr.mxu0 0.0
  %582 = vmatpush1.msra.mxu0 %v56
  %583 = vmatprep.subr.mxu0 0.0
  %584 = vmatpush1.msra.mxu0 %v57
  %585 = vmatprep.subr.mxu0 0.0
  %586 = vmatpush1.msra.mxu0 %v58
  %587 = vmatprep.subr.mxu0 0.0
  %588 = vmatpush1.msra.mxu0 0.0
  %589 = vmatprep.subr.mxu0 0.0
  %590 = vmatpush1.msra.mxu0 0.0
  %591 = vmatprep.subr.mxu0 0.0
  %592 = vmatpush1.msra.mxu0 0.0
  %593 = vmatprep.subr.mxu0 0.0
  %594 = vmatpush1.msra.mxu0 0.0
  %595 = vmatprep.subr.mxu0 0.0
  %596 = vmatpush1.msra.mxu0 0.0
  %597 = vmatprep.subr.mxu0 0.0
  %598 = vmatpush1.msra.mxu0 0.0
  %599 = vmatprep.subr.mxu0 0.0
  %600 = vmatpush1.msra.mxu0 0.0
  %601 = vmatprep.subr.mxu0 0.0
  %602 = vmatpush1.msra.mxu0 0.0
  %603 = vmatprep.subr.mxu0 0.0
  %604 = vmatpush1.msra.mxu0 0.0
  %605 = vmatprep.subr.mxu0 0.0
  %606 = vmatpush1.msra.mxu0 0.0
  %607 = vmatprep.subr.mxu0 0.0
  %608 = vmatpush1.msra.mxu0 0.0
  %609 = vmatprep.subr.mxu0 0.0
  %610 = vmatpush1.msra.mxu0 0.0
  %611 = vmatprep.subr.mxu0 0.0
  %612 = vmatpush1.msra.mxu0 0.0
  %613 = vmatprep.subr.mxu0 0.0
  %614 = vmatpush1.msra.mxu0 0.0
  %615 = vmatprep.subr.mxu0 0.0
  %616 = vmatpush1.msra.mxu0 0.0
  %617 = vmatprep.subr.mxu0 0.0
  %618 = vmatpush1.msra.mxu0 0.0
  %619 = vmatprep.subr.mxu0 0.0
  %620 = vmatpush1.msra.mxu0 0.0
  %621 = vmatprep.subr.mxu0 0.0
  %622 = vmatpush1.msra.mxu0 0.0
  %623 = vmatprep.subr.mxu0 0.0
  %624 = vmatpush1.msra.mxu0 0.0
  %625 = vmatprep.subr.mxu0 0.0
  %626 = vmatpush1.msra.mxu0 0.0
  %627 = vmatprep.subr.mxu0 0.0
  %628 = vmatpush1.msra.mxu0 0.0
  %629 = vmatprep.subr.mxu0 0.0
  %630 = vmatpush1.msra.mxu0 0.0
  %631 = vmatprep.subr.mxu0 0.0
  %632 = vmatpush1.msra.mxu0 0.0
  %633 = vmatprep.subr.mxu0 0.0
  %634 = vmatpush1.msra.mxu0 0.0
  %635 = vmatprep.subr.mxu0 0.0
  %636 = vmatpush1.msra.mxu0 0.0
  %637 = vmatprep.subr.mxu0 0.0
  %638 = vmatpush1.msra.mxu0 0.0
  %639 = vmatprep.subr.mxu0 0.0
  %640 = vmatpush1.msra.mxu0 0.0
  %641 = vmatprep.subr.mxu0 0.0
  %642 = vmatpush1.msra.mxu0 0.0
  %643 = vmatprep.mubr.f32.mxu0 0.0
  %644 = vmatmul.mubr.f32.gmra.mrb[0].mxu0 %v577
  %v645 = vpop.f32.mrb[0].mxu0
  %v646 = vadd.f32 0.0, %v645
  %v647 = vpop.f32.mrb[0].mxu0
  %648 = vdwg.mxu0
  %v650 = vrot.slane %v646, 6
  %v652 = vadd.f32 %v54, %v650
  %v653 = vmul.f32 %v652, %v64
  %v654 = vtanh.pop %v653
  %v655 = vmul.f32 %v654, %v64
  %v656 = vadd.f32 %v655, %v65
  %v658 = vrot.slane %v567, 6
  %v660 = vmul.f32 %v656, %v658
  %662 = vrot.lane.b32.xlu0 %v656, 64
  %v663 = vpop.permute.xlu0 %662
  %v665 = vmul.f32 %v656, %v663
  %667 = vrot.lane.b32.xlu0 %v665, 32
  %v668 = vpop.permute.xlu0 %667
  %v670 = vadd.f32 %v660, %v668
  %v671 = vtanh.pop %v670
  %673 = vrot.lane.b32.xlu0 %v671, 64
  %v674 = vpop.permute.xlu0 %673
  %v676 = vmul.f32 %v656, %v674
  %v678 = vrot.slane %v676, 2
  %679 = vrot.lane.b32.xlu0 %v678, 32
  %v680 = vpop.permute.xlu0 %679
  %v681 = vsel %vm66, %v680, 0
  %683 = vmatprep.subr.mxu0 0.0
  %684 = vmatpush1.msra.mxu0 %v55
  %685 = vmatprep.subr.mxu0 0.0
  %686 = vmatpush1.msra.mxu0 %v56
  %687 = vmatprep.subr.mxu0 0.0
  %688 = vmatpush1.msra.mxu0 %v57
  %689 = vmatprep.subr.mxu0 0.0
  %690 = vmatpush1.msra.mxu0 %v58
  %691 = vmatprep.subr.mxu0 0.0
  %692 = vmatpush1.msra.mxu0 0.0
  %693 = vmatprep.subr.mxu0 0.0
  %694 = vmatpush1.msra.mxu0 0.0
  %695 = vmatprep.subr.mxu0 0.0
  %696 = vmatpush1.msra.mxu0 0.0
  %697 = vmatprep.subr.mxu0 0.0
  %698 = vmatpush1.msra.mxu0 0.0
  %699 = vmatprep.subr.mxu0 0.0
  %700 = vmatpush1.msra.mxu0 0.0
  %701 = vmatprep.subr.mxu0 0.0
  %702 = vmatpush1.msra.mxu0 0.0
  %703 = vmatprep.subr.mxu0 0.0
  %704 = vmatpush1.msra.mxu0 0.0
  %705 = vmatprep.subr.mxu0 0.0
  %706 = vmatpush1.msra.mxu0 0.0
  %707 = vmatprep.subr.mxu0 0.0
  %708 = vmatpush1.msra.mxu0 0.0
  %709 = vmatprep.subr.mxu0 0.0
  %710 = vmatpush1.msra.mxu0 0.0
  %711 = vmatprep.subr.mxu0 0.0
  %712 = vmatpush1.msra.mxu0 0.0
  %713 = vmatprep.subr.mxu0 0.0
  %714 = vmatpush1.msra.mxu0 0.0
  %715 = vmatprep.subr.mxu0 0.0
  %716 = vmatpush1.msra.mxu0 0.0
  %717 = vmatprep.subr.mxu0 0.0
  %718 = vmatpush1.msra.mxu0 0.0
  %719 = vmatprep.subr.mxu0 0.0
  %720 = vmatpush1.msra.mxu0 0.0
  %721 = vmatprep.subr.mxu0 0.0
  %722 = vmatpush1.msra.mxu0 0.0
  %723 = vmatprep.subr.mxu0 0.0
  %724 = vmatpush1.msra.mxu0 0.0
  %725 = vmatprep.subr.mxu0 0.0
  %726 = vmatpush1.msra.mxu0 0.0
  %727 = vmatprep.subr.mxu0 0.0
  %728 = vmatpush1.msra.mxu0 0.0
  %729 = vmatprep.subr.mxu0 0.0
  %730 = vmatpush1.msra.mxu0 0.0
  %731 = vmatprep.subr.mxu0 0.0
  %732 = vmatpush1.msra.mxu0 0.0
  %733 = vmatprep.subr.mxu0 0.0
  %734 = vmatpush1.msra.mxu0 0.0
  %735 = vmatprep.subr.mxu0 0.0
  %736 = vmatpush1.msra.mxu0 0.0
  %737 = vmatprep.subr.mxu0 0.0
  %738 = vmatpush1.msra.mxu0 0.0
  %739 = vmatprep.subr.mxu0 0.0
  %740 = vmatpush1.msra.mxu0 0.0
  %741 = vmatprep.subr.mxu0 0.0
  %742 = vmatpush1.msra.mxu0 0.0
  %743 = vmatprep.subr.mxu0 0.0
  %744 = vmatpush1.msra.mxu0 0.0
  %745 = vmatprep.subr.mxu0 0.0
  %746 = vmatpush1.msra.mxu0 0.0
  %747 = vmatprep.mubr.f32.mxu0 0.0
  %748 = vmatmul.mubr.f32.gmra.mrb[0].mxu0 %v681
  %v749 = vpop.f32.mrb[0].mxu0
  %v750 = vadd.f32 0.0, %v749
  %v751 = vpop.f32.mrb[0].mxu0
  %752 = vdwg.mxu0
  %v754 = vrot.slane %v750, 4
  %v756 = vadd.f32 %v54, %v754
  %v757 = vmul.f32 %v756, %v64
  %v758 = vtanh.pop %v757
  %v759 = vmul.f32 %v758, %v64
  %v760 = vadd.f32 %v759, %v65
  %v762 = vrot.slane %v670, 6
  %v764 = vmul.f32 %v760, %v762
  %766 = vrot.lane.b32.xlu0 %v760, 64
  %v767 = vpop.permute.xlu0 %766
  %v769 = vmul.f32 %v760, %v767
  %771 = vrot.lane.b32.xlu0 %v769, 32
  %v772 = vpop.permute.xlu0 %771
  %v774 = vadd.f32 %v764, %v772
  %v775 = vtanh.pop %v774
  %777 = vrot.lane.b32.xlu0 %v775, 64
  %v778 = vpop.permute.xlu0 %777
  %v780 = vmul.f32 %v760, %v778
  %v782 = vrot.slane %v780, 4
  %783 = vrot.lane.b32.xlu0 %v782, 32
  %v784 = vpop.permute.xlu0 %783
  %v785 = vsel %vm66, %v784, 0
  %787 = vmatprep.subr.mxu0 0.0
  %788 = vmatpush1.msra.mxu0 %v55
  %789 = vmatprep.subr.mxu0 0.0
  %790 = vmatpush1.msra.mxu0 %v56
  %791 = vmatprep.subr.mxu0 0.0
  %792 = vmatpush1.msra.mxu0 %v57
  %793 = vmatprep.subr.mxu0 0.0
  %794 = vmatpush1.msra.mxu0 %v58
  %795 = vmatprep.subr.mxu0 0.0
  %796 = vmatpush1.msra.mxu0 0.0
  %797 = vmatprep.subr.mxu0 0.0
  %798 = vmatpush1.msra.mxu0 0.0
  %799 = vmatprep.subr.mxu0 0.0
  %800 = vmatpush1.msra.mxu0 0.0
  %801 = vmatprep.subr.mxu0 0.0
  %802 = vmatpush1.msra.mxu0 0.0
  %803 = vmatprep.subr.mxu0 0.0
  %804 = vmatpush1.msra.mxu0 0.0
  %805 = vmatprep.subr.mxu0 0.0
  %806 = vmatpush1.msra.mxu0 0.0
  %807 = vmatprep.subr.mxu0 0.0
  %808 = vmatpush1.msra.mxu0 0.0
  %809 = vmatprep.subr.mxu0 0.0
  %810 = vmatpush1.msra.mxu0 0.0
  %811 = vmatprep.subr.mxu0 0.0
  %812 = vmatpush1.msra.mxu0 0.0
  %813 = vmatprep.subr.mxu0 0.0
  %814 = vmatpush1.msra.mxu0 0.0
  %815 = vmatprep.subr.mxu0 0.0
  %816 = vmatpush1.msra.mxu0 0.0
  %817 = vmatprep.subr.mxu0 0.0
  %818 = vmatpush1.msra.mxu0 0.0
  %819 = vmatprep.subr.mxu0 0.0
  %820 = vmatpush1.msra.mxu0 0.0
  %821 = vmatprep.subr.mxu0 0.0
  %822 = vmatpush1.msra.mxu0 0.0
  %823 = vmatprep.subr.mxu0 0.0
  %824 = vmatpush1.msra.mxu0 0.0
  %825 = vmatprep.subr.mxu0 0.0
  %826 = vmatpush1.msra.mxu0 0.0
  %827 = vmatprep.subr.mxu0 0.0
  %828 = vmatpush1.msra.mxu0 0.0
  %829 = vmatprep.subr.mxu0 0.0
  %830 = vmatpush1.msra.mxu0 0.0
  %831 = vmatprep.subr.mxu0 0.0
  %832 = vmatpush1.msra.mxu0 0.0
  %833 = vmatprep.subr.mxu0 0.0
  %834 = vmatpush1.msra.mxu0 0.0
  %835 = vmatprep.subr.mxu0 0.0
  %836 = vmatpush1.msra.mxu0 0.0
  %837 = vmatprep.subr.mxu0 0.0
  %838 = vmatpush1.msra.mxu0 0.0
  %839 = vmatprep.subr.mxu0 0.0
  %840 = vmatpush1.msra.mxu0 0.0
  %841 = vmatprep.subr.mxu0 0.0
  %842 = vmatpush1.msra.mxu0 0.0
  %843 = vmatprep.subr.mxu0 0.0
  %844 = vmatpush1.msra.mxu0 0.0
  %845 = vmatprep.subr.mxu0 0.0
  %846 = vmatpush1.msra.mxu0 0.0
  %847 = vmatprep.subr.mxu0 0.0
  %848 = vmatpush1.msra.mxu0 0.0
  %849 = vmatprep.subr.mxu0 0.0
  %850 = vmatpush1.msra.mxu0 0.0
  %851 = vmatprep.mubr.f32.mxu0 0.0
  %852 = vmatmul.mubr.f32.gmra.mrb[0].mxu0 %v785
  %v853 = vpop.f32.mrb[0].mxu0
  %v854 = vadd.f32 0.0, %v853
  %v855 = vpop.f32.mrb[0].mxu0
  %856 = vdwg.mxu0
  %v858 = vrot.slane %v854, 2
  %v860 = vadd.f32 %v54, %v858
  %v861 = vmul.f32 %v860, %v64
  %v862 = vtanh.pop %v861
  %v863 = vmul.f32 %v862, %v64
  %v864 = vadd.f32 %v863, %v65
  %v866 = vrot.slane %v774, 6
  %v868 = vmul.f32 %v864, %v866
  %870 = vrot.lane.b32.xlu0 %v864, 64
  %v871 = vpop.permute.xlu0 %870
  %v873 = vmul.f32 %v864, %v871
  %875 = vrot.lane.b32.xlu0 %v873, 32
  %v876 = vpop.permute.xlu0 %875
  %v878 = vadd.f32 %v868, %v876
  %v879 = vtanh.pop %v878
  %881 = vrot.lane.b32.xlu0 %v879, 64
  %v882 = vpop.permute.xlu0 %881
  %v884 = vmul.f32 %v864, %v882
  %v885 = vld [vmem:[%s4] sm:$0x1]
  %v887 = vlaneseq
  %v888 = vshrl.u32 %v887, 7
  %v889 = vsub.s32 0, %v888
  %v890 = vrot.slane %v885, %v889
  %891 = vrot.lane.b32.xlu0 %v890, 96
  %v892 = vpop.permute.xlu0 %891
  %v894 = vmul.f32 %v884, %v892
  %896 = vrot.lane.b32.xlu0 %v894, 32
  %v897 = vpop.permute.xlu0 %896
  %vm899 = vcmask 261126
  %v900 = vsel %vm899, %v897, 0.0
  %901 = vadd.xlane.f32.xlu0 %v900
  %v902 = vpop.xlane.xlu0 %901
  %v903 = vld [vmem:[#allocation2] sm:$0x1]
  %v905 = vlaneseq
  %v906 = vshrl.u32 %v905, 7
  %v907 = vsub.s32 0, %v906
  %v908 = vrot.slane %v903, %v907
  %v910 = vadd.f32 %v902, %v908
  %vm911 = vcmask 7174
  %912 = vst.msk [vmem:[%s6 - $0x6] sm:$0xc0] %vm911, %v910
  // Predicated region
  $region26: #{lstm_model_forward.1} parent=0 // pred_check
    _
  $region27: #{lstm_model_forward.1} parent=0 // pred_check_branch
    %914 = sbr.rel (0) target = $region29
  $region28: #{lstm_model_forward.1} parent=0 // pred_region
    _
  $region29: #{lstm_model_forward.1} parent=0 // pred_fallthru
    _
  // Predicated region
  $region30: #{lstm_model_forward.1} parent=0 // pred_check
    _
  $region31: #{lstm_model_forward.1} parent=0 // pred_check_branch
    %916 = sbr.rel (0) target = $region33
  $region32: #{lstm_model_forward.1} parent=0 // pred_region
    _
  $region33: #{lstm_model_forward.1} parent=0 // pred_fallthru
    _

</llo_original>
